<compile_context>
chip_gen: v6e
topology: v6e:2x2x1
jax: 0.10.0
libtpu: 0.0.40
codegen_flags: <defaults>
</compile_context>

<pallas_src>
import functools

import jax
import jax.numpy as jnp
from jax.experimental import pallas as pl
from jax.experimental.pallas import tpu as pltpu


_LANES = 1024                    # lane-dense last dim (multiple of 128 -> unmasked vst)
_TILE_BYTES = 2 * 1024 * 1024    # per-buffer tile budget; x2 arrays x2 buffers = 8 MiB VMEM


def _grl_bwd_kernel(neg_coeff_ref, g_ref, o_ref):
    # Gradient reversal: g * (-coeff). The negation is pre-folded into the
    # SMEM scalar; cast it once to the gradient dtype so bf16 gradients stay
    # bf16 on the VPU (no widen/narrow per vreg).
    scale = neg_coeff_ref[0].astype(o_ref.dtype)
    o_ref[...] = g_ref[...] * scale


def _round_up(x, m):
    return ((x + m - 1) // m) * m


def _reverse_pallas(g, coeff):
    """Compute -coeff * g with a tiled, double-buffered Pallas kernel."""
    orig_shape = g.shape
    orig_dtype = g.dtype
    total = g.size
    if total == 0:
        return g

    itemsize = jnp.dtype(orig_dtype).itemsize
    rows = pl.cdiv(total, _LANES)
    padded_total = rows * _LANES

    # Byte-budgeted tile height (multiple of 8 sublanes).
    budget_rows = max(8, (_TILE_BYTES // (_LANES * itemsize)) // 8 * 8)
    if rows > 16:
        # Keep >= 2 grid steps so v7x's two TensorCores both drive HBM.
        tile_rows = min(budget_rows, _round_up(pl.cdiv(rows, 2), 8))
    else:
        tile_rows = rows          # single full-extent block (may be < 8 rows)

    flat = g.reshape(-1)
    if padded_total != total:     # <= 1023 pad elements; skipped when aligned
        flat = jnp.pad(flat, (0, padded_total - total))
    g2d = flat.reshape(rows, _LANES)

    # Fold the negation into the scalar; keep it 32-bit in SMEM.
    neg_coeff = (-jnp.asarray(coeff, dtype=jnp.float32)).reshape((1,))

    out2d = pl.pallas_call(
        _grl_bwd_kernel,
        out_shape=jax.ShapeDtypeStruct((rows, _LANES), orig_dtype),
        grid=(pl.cdiv(rows, tile_rows),),           # ragged last block is masked
        in_specs=[
            pl.BlockSpec(memory_space=pltpu.MemorySpace.SMEM),      # -coeff scalar
            pl.BlockSpec((tile_rows, _LANES), lambda i: (i, 0)),    # grad tiles
        ],
        out_specs=pl.BlockSpec((tile_rows, _LANES), lambda i: (i, 0)),
        input_output_aliases={1: 0},                # reuse the cotangent buffer
        cost_estimate=pl.CostEstimate(
            flops=padded_total,
            transcendentals=0,
            bytes_accessed=2 * padded_total * itemsize),
        compiler_params=pltpu.CompilerParams(
            dimension_semantics=("parallel",)),
    )(neg_coeff, g2d)

    if padded_total != total:
        return out2d.reshape(-1)[:total].reshape(orig_shape)
    return out2d.reshape(orig_shape)


# coeff is a static (non-differentiable) Python float; the PyTorch Function
# returns None for its cotangent, which maps to nondiff_argnums here.
@functools.partial(jax.custom_vjp, nondiff_argnums=(1,))
def grl(x, coeff=1.0):
    # Forward is identity (x * 1.0 in the PyTorch reference). No kernel launch.
    return x


def _grl_fwd(x, coeff):
    return x, None


def _grl_bwd(coeff, _res, g):
    # TODO(synk): when the upstream producer of `g` can fuse an elementwise
    # scale, returning `-coeff * g` directly and letting XLA fuse it would
    # save one HBM round-trip; kept as an explicit Pallas kernel here.
    return (_reverse_pallas(g, coeff),)


grl.defvjp(_grl_fwd, _grl_bwd)


class GRL:
    """JAX/Pallas equivalent of the PyTorch GRL module (no parameters)."""

    def __call__(self, x, coeff=1.0):
        return grl(x, coeff)


if __name__ == "__main__":
    key = jax.random.PRNGKey(0)
    x = jax.random.normal(key, (2, 4, 16, 16), dtype=jnp.float32)

    model = GRL()

    # Forward pass (identity, no kernel).
    y = jax.block_until_ready(model(x))
    assert y.shape == x.shape and y.dtype == x.dtype
    assert jnp.allclose(y, x), "forward must be identity"

    # Gradient check through the Pallas backward kernel:
    # d/dx sum(GRL(x, coeff)) == -coeff everywhere.
    coeff = 2.0
    g = jax.block_until_ready(jax.grad(lambda t: jnp.sum(model(t, coeff)))(x))
    assert g.shape == x.shape and g.dtype == x.dtype
    assert jnp.allclose(g, jnp.full_like(x, -coeff)), "backward must reverse gradient"

    # Direct kernel checks: aligned shape, ragged/padded tail, and a
    # multi-step grid with a ragged last block.
    k1, k2 = jax.random.split(jax.random.PRNGKey(1))
    for shape in [(2, 4, 16, 16), (3, 5, 7), (40, 1000)]:
        gin = jax.random.normal(k1, shape, dtype=jnp.float32)
        gout = jax.block_until_ready(_reverse_pallas(gin, coeff))
        assert gout.shape == gin.shape and gout.dtype == gin.dtype
        assert jnp.allclose(gout, -coeff * gin, atol=1e-6), f"mismatch at {shape}"

    # bf16 path (byte-budgeted taller tiles, in-dtype multiply).
    gin_bf16 = jax.random.normal(k2, (2, 4, 16, 16), dtype=jnp.bfloat16)
    gout_bf16 = jax.block_until_ready(_reverse_pallas(gin_bf16, coeff))
    assert gout_bf16.dtype == jnp.bfloat16
    assert jnp.allclose(gout_bf16.astype(jnp.float32),
                        -coeff * gin_bf16.astype(jnp.float32),
                        rtol=1e-2, atol=1e-2), "bf16 reverse mismatch"

    print("KERNEL_OK")
</pallas_src>

<mosaic_0001>
module attributes {stable_mosaic.version = 11 : i64} {
  func.func @_grl_bwd_kernel(%arg0: i32, %arg1: memref<1xf32, #tpu.memory_space<smem>>, %arg2: memref<2x1024xf32, #tpu.memory_space<vmem>>, %arg3: memref<2x1024xf32, #tpu.memory_space<vmem>>) attributes {dimension_semantics = [#tpu.dimension_semantics<parallel>], iteration_bounds = array<i64: 1>, scalar_prefetch = 0 : i64, scratch_operands = 0 : i64, tpu.core_type = #tpu.core_type<tc>, window_params = [{transform_indices = @transform_0, window_bounds = array<i64: 1>}, {transform_indices = @transform_1, window_bounds = array<i64: 2, 1024>}, {transform_indices = @transform_2, window_bounds = array<i64: 2, 1024>}]} {
    %c0 = arith.constant 0 : index
    %0 = memref.load %arg1[%c0] : memref<1xf32, #tpu.memory_space<smem>>
    %c0_0 = arith.constant 0 : index
    %c0_1 = arith.constant 0 : index
    %1 = vector.load %arg2[%c0_0, %c0_1] : memref<2x1024xf32, #tpu.memory_space<vmem>>, vector<2x1024xf32>
    %2 = vector.broadcast %0 : f32 to vector<2x1024xf32>
    %3 = arith.mulf %1, %2 : vector<2x1024xf32>
    %c0_2 = arith.constant 0 : index
    %c0_3 = arith.constant 0 : index
    %4 = vector.load %arg3[%c0_2, %c0_3] : memref<2x1024xf32, #tpu.memory_space<vmem>>, vector<2x1024xf32>
    tpu.vector_store %arg3[%c0_2, %c0_3], %3 {strides = array<i32>} : memref<2x1024xf32, #tpu.memory_space<vmem>>, vector<2x1024xf32>,
    return
  }
  func.func @transform_0(%arg0: i32) -> i32 {
    %c0_i32 = arith.constant 0 : i32
    %c0_i32_0 = arith.constant 0 : i32
    return %c0_i32 : i32
  }
  func.func @transform_1(%arg0: i32) -> (i32, i32) {
    %c0_i32 = arith.constant 0 : i32
    %c0_i32_0 = arith.constant 0 : i32
    return %arg0, %c0_i32 : i32, i32
  }
  func.func @transform_2(%arg0: i32) -> (i32, i32) {
    %c0_i32 = arith.constant 0 : i32
    %c0_i32_0 = arith.constant 0 : i32
    return %arg0, %c0_i32 : i32, i32
  }
}

</mosaic_0001>

<llo_original>
// kernel: tpu_custom_call.1
$region0: #{tpu_custom_call.1}
  #allocation0 [shape = 'u32[]', space=smem, size = 0x4, offset = 0x4, fixed_abs, tag = 'smem constant byte address 0x4 - core index']
  #allocation1 [shape = 'u32[144,128]{1,0:T(1,128)}', space=vmem, size = 0x12000, scoped, tag = 'internal scratch']
  #allocation2 [shape = 'f32[1]{0:T(128)S(6)}', space=smem, size = 0x200, scoped, tag = 'scoped memory for tpu_custom_call.1']
  %s0 = inlined_call_operand.<no memory space> [shape: f32[1], index: 0, kind: input, shape index: {}]
  %s1 = inlined_call_operand.hbm [shape: f32[2,1024], index: 1, kind: input, shape index: {}, may-alias: {1,2}]
  %s2 = inlined_call_operand.hbm [shape: f32[2,1024], index: 2, kind: output, shape index: {}, may-alias: {1,2}]
  %s3 = sld [smem:[#allocation0]]
  $region22: #{tpu_custom_call.1} parent=0
    _
  %s5 = ssub.s32 1, %s3
  %s6 = scalar_select 0, %s5, %s3
  %7 = sst [smem:[#allocation2]] %s0
  $region1: #{tpu_custom_call.1} parent=0
    #allocation3 [shape = 'u8[8192]{0}', space=vmem, size = 0x2000, scoped, tag = 'input window, operand 1, single buffered']
    #allocation4 [shape = 's32[1]{0}', space=sflag, size = 0x4, scoped, tag = 'scoped memory for tpu_custom_call.1']
    #allocation5 [shape = 's32[1]{0}', space=sflag, size = 0x4, scoped, tag = 'scoped memory for tpu_custom_call.1']
    #allocation6 [shape = 'u8[8192]{0}', space=vmem, size = 0x2000, scoped, tag = 'output window, operand 0, single buffered']
    %8 = vsyncpa [#allocation4], 0
    %9 = vsyncpa [#allocation5], 0
    // Predicated region
    $region2: #{tpu_custom_call.1} parent=1 // pred_check
      _
    $region3: #{tpu_custom_call.1} parent=1 // pred_check_branch
      %11 = sbr.rel (0) target = $region5
    $region4: #{tpu_custom_call.1} parent=1 // pred_region
      _
    $region5: #{tpu_custom_call.1} parent=1 // pred_fallthru
      _
    // Predicated region
    $region6: #{tpu_custom_call.1} parent=1 // pred_check
      _
    $region7: #{tpu_custom_call.1} parent=1 // pred_check_branch
      %13 = sbr.rel (0) target = $region9
    $region8: #{tpu_custom_call.1} parent=1 // pred_region
      %s15 = ssub.s32 256, 256
      %16 = vsyncadd [#allocation4], %s15
      %s18 = sshll.u32 [#allocation3], 4
      %s19 = int_to_ptr.vmem [resolvable:$true] %s18
      %21 = dma.hbm_to_vmem [thread:$0]  %s1, 256, %s19, [#allocation4]
    $region9: #{tpu_custom_call.1} parent=1 // pred_fallthru
      _
    // Predicated region
    $region10: #{tpu_custom_call.1} parent=1 // pred_check
      _
    $region11: #{tpu_custom_call.1} parent=1 // pred_check_branch
      %23 = sbr.rel (0) target = $region13
    $region12: #{tpu_custom_call.1} parent=1 // pred_region
      %24 = dma.done [#allocation4], 256
    $region13: #{tpu_custom_call.1} parent=1 // pred_fallthru
      _
    %s25 = sld [smem:[#allocation2]]
    %v26 = vld [vmem:[#allocation3] sm:$0xff]
    %v27 = vld [vmem:[#allocation3 + $0x8] sm:$0xff]
    %v28 = vstv %s25
    %v29 = vmul.f32 %v26, %v28
    %v30 = vmul.f32 %v27, %v28
    %31 = vst [vmem:[#allocation6] sm:$0xff] %v29
    %32 = vst [vmem:[#allocation6 + $0x8] sm:$0xff] %v30
    // Predicated region
    $region14: #{tpu_custom_call.1} parent=1 // pred_check
      _
    $region15: #{tpu_custom_call.1} parent=1 // pred_check_branch
      %34 = sbr.rel (0) target = $region17
    $region16: #{tpu_custom_call.1} parent=1 // pred_region
      %s36 = ssub.s32 256, 256
      %37 = vsyncadd [#allocation5], %s36
      %s39 = sshll.u32 [#allocation6], 4
      %s40 = int_to_ptr.vmem [resolvable:$true] %s39
      %42 = dma.vmem_to_hbm [thread:$0]  %s40, 256, %s2, [#allocation5]
    $region17: #{tpu_custom_call.1} parent=1 // pred_fallthru
      _
    // Predicated region
    $region18: #{tpu_custom_call.1} parent=1 // pred_check
      _
    $region19: #{tpu_custom_call.1} parent=1 // pred_check_branch
      %44 = sbr.rel (0) target = $region21
    $region20: #{tpu_custom_call.1} parent=1 // pred_region
      %45 = dma.done [#allocation5], 256
    $region21: #{tpu_custom_call.1} parent=1 // pred_fallthru
      _
    %46 = vsyncpa [#allocation4], 1
    %47 = vsyncpa [#allocation5], 1

</llo_original>
